<compile_context>
chip_gen: v7x
topology: tpu7x:2x2x1
jax: 0.10.0
libtpu: 0.0.40
codegen_flags: <defaults>
</compile_context>

<pallas_src>
import functools

import jax
import jax.numpy as jnp
from jax.experimental import pallas as pl
from jax.experimental.pallas import tpu as pltpu


def dygcn_kernel(x_ref, emb_ref, stockf_ref, wpool_t_ref, bpool_ref, s_ref,
                 r_ref, out_ref, *, cheby_k):
    """One grid step: Bt batch elements, fully resident in VMEM.

    Shapes inside the kernel (Bt = batch block, N nodes, I=dim_in, O=dim_out,
    E=embed_dim, K=cheby_k):
      x_ref       (Bt, N, I)
      emb_ref     (Bt, N, E)
      stockf_ref  (Bt*N, E)       batch folded into rows (M dimension)
      wpool_t_ref (K*I, E*O)      wpool_t[k*I+i, e*O+o] = weights_pool[e,k,i,o]
      bpool_ref   (E, O)
      s_ref       (E, E*O)        S[e', e*O+o] = 1[e'==e]  (lane "repeat")
      r_ref       (E*O, O)        R[e*O+o, o'] = 1[o==o']  (lane "fold")
      out_ref     (Bt*N, O)
    """
    x = x_ref[...]                               # (Bt, N, I) f32
    emb = emb_ref[...]                           # (Bt, N, E) f32
    stockf = stockf_ref[...]                     # (Bt*N, E)  f32
    bt, n, dim_in = x.shape

    # --- dynamic adjacency + row softmax.
    # (A bf16 cast of the MXU inputs here would roughly halve MXU cycles on all
    #  generations but breaks the strict 1e-4 reference check, so it's left f32.)
    a = jnp.einsum('bne,bme->bnm', emb, emb,
                   preferred_element_type=jnp.float32)         # (Bt, N, N)
    a = jnp.maximum(a, 0.0)
    a = a - jnp.max(a, axis=-1, keepdims=True)
    e = jnp.exp(a)
    denom = jnp.sum(e, axis=-1, keepdims=True)
    # pl.reciprocal(denom, approx=True) would move this to the (otherwise free)
    # EUP slot; exact division is kept to preserve the 1e-4 tolerance.
    supports = e / denom                                       # (Bt, N, N)

    # --- Chebyshev recursion directly on x_g (never materialize T_k):
    #       xg_0 = x,  xg_1 = S @ x,  xg_k = 2*S @ xg_{k-1} - xg_{k-2}
    xg_prev = x
    xg_cur = jnp.einsum('bnm,bmi->bni', supports, x,
                        preferred_element_type=jnp.float32)
    xg_list = [xg_prev, xg_cur]
    for _ in range(2, cheby_k):
        xg_next = (2.0 * jnp.einsum('bnm,bmi->bni', supports, xg_cur,
                                    preferred_element_type=jnp.float32)
                   - xg_prev)
        xg_list.append(xg_next)
        xg_prev, xg_cur = xg_cur, xg_next

    # --- per-node graph conv as MXU matmuls (batch folded into M = Bt*N):
    #   m[n, e*O+o] = sum_{k,i} xg_k[n,i] * weights_pool[e,k,i,o]
    #   out[n, o]   = sum_e stock[n,e] * m[n, e*O+o] + bias[n, o]
    eo = wpool_t_ref.shape[1]
    m = jnp.zeros((bt * n, eo), dtype=jnp.float32)
    for k in range(cheby_k):
        xg_k = xg_list[k].reshape(bt * n, dim_in)          # leading-dim merge only
        w_k = wpool_t_ref[k * dim_in:(k + 1) * dim_in, :]  # 8-aligned sublane slice
        m = m + jnp.dot(xg_k, w_k, preferred_element_type=jnp.float32)

    # Per-node weighting via constant selector matmuls: no unaligned lane
    # slices and no cross-lane reshapes; all contractions stay on the MXU with
    # 128-lane-dense operands.
    stock_rep = jnp.dot(stockf, s_ref[...],
                        preferred_element_type=jnp.float32)    # (Bt*N, E*O)
    bias = jnp.dot(stockf, bpool_ref[...],
                   preferred_element_type=jnp.float32)         # (Bt*N, O)
    res = jnp.dot(stock_rep * m, r_ref[...],
                  preferred_element_type=jnp.float32) + bias   # (Bt*N, O)

    # NOTE: packing the output lane-dense as (Bt, N*O) would require a
    # sublane->lane relayout in-kernel; at these shapes the (., O) store is
    # negligible, so the robust 2-D (Bt*N, O) layout is kept.
    out_ref[...] = res.astype(out_ref.dtype)


def dygcn_pallas(x, all_emb, stock_emb, weights_pool, bias_pool, cheby_k,
                 *, batch_block=8):
    b, n, dim_in = x.shape
    embed_dim = all_emb.shape[-1]
    dim_out = bias_pool.shape[-1]
    assert cheby_k >= 2, "module semantics require cheby_k >= 2"

    # Batch blocking: Bt batch elements per grid step (amortizes ~0.35us/step
    # grid overhead and enlarges DMAs). On v7x keep b//bt >= 2 so both
    # TensorCores get work, and re-derive bt against its 64 MiB VMEM if N grows.
    bt = b if b <= batch_block else batch_block
    assert b % bt == 0, "batch must be divisible by the batch block"

    # Host-side relayouts of the grid-invariant parameters (no in-kernel
    # relayout; constant index maps so they are DMA'd as-is every step):
    #   wpool_t[k*I + i, e*O + o] = weights_pool[e, k, i, o]
    wpool_t = jnp.transpose(weights_pool, (1, 2, 0, 3)).reshape(
        cheby_k * dim_in, embed_dim * dim_out)
    # Constant selector matrices for the matmul-only epilogue.
    s_mat = jnp.repeat(jnp.eye(embed_dim, dtype=jnp.float32), dim_out, axis=1)
    r_mat = jnp.tile(jnp.eye(dim_out, dtype=jnp.float32), (embed_dim, 1))
    # Fold batch into rows for all batch-shared matmuls (M = B*N).
    stock_flat = stock_emb.reshape(b * n, embed_dim)

    kernel = functools.partial(dygcn_kernel, cheby_k=cheby_k)

    out2d = pl.pallas_call(
        kernel,
        out_shape=jax.ShapeDtypeStruct((b * n, dim_out), jnp.float32),
        grid_spec=pltpu.PrefetchScalarGridSpec(
            num_scalar_prefetch=0,
            grid=(b // bt,),
            in_specs=[
                pl.BlockSpec((bt, n, dim_in), lambda bi: (bi, 0, 0)),
                pl.BlockSpec((bt, n, embed_dim), lambda bi: (bi, 0, 0)),
                pl.BlockSpec((bt * n, embed_dim), lambda bi: (bi, 0)),
                pl.BlockSpec((cheby_k * dim_in, embed_dim * dim_out),
                             lambda bi: (0, 0)),
                pl.BlockSpec((embed_dim, dim_out), lambda bi: (0, 0)),
                pl.BlockSpec((embed_dim, embed_dim * dim_out),
                             lambda bi: (0, 0)),
                pl.BlockSpec((embed_dim * dim_out, dim_out),
                             lambda bi: (0, 0)),
            ],
            out_specs=pl.BlockSpec((bt * n, dim_out), lambda bi: (bi, 0)),
        ),
        compiler_params=pltpu.CompilerParams(
            dimension_semantics=("parallel",)),
    )(x, all_emb, stock_flat, wpool_t, bias_pool, s_mat, r_mat)

    return out2d.reshape(b, n, dim_out)


def dygcn_ref(x, all_emb, stock_emb, weights_pool, bias_pool, cheby_k):
    """Pure-JAX reference mirroring the PyTorch forward (aggregate_type='sum')."""
    bsz, n, _ = all_emb.shape
    a = jax.nn.relu(jnp.einsum('bne,bme->bnm', all_emb, all_emb))
    supports = jax.nn.softmax(a, axis=-1)
    t0 = jnp.broadcast_to(jnp.eye(n, dtype=x.dtype), (bsz, n, n))
    support_set = [t0, supports]
    for _ in range(2, cheby_k):
        support_set.append(2.0 * jnp.matmul(supports, support_set[-1])
                           - support_set[-2])
    sc = jnp.stack(support_set, axis=1)                        # (B, K, N, N)
    weights = jnp.einsum('bni,ikop->bnkop', stock_emb, weights_pool)
    bias = jnp.matmul(stock_emb, bias_pool)
    x_g = jnp.einsum('bkij,bjd->bkid', sc, x)
    x_g_conv = jnp.einsum('bkni,bnkio->bnko', x_g, weights)
    return x_g_conv.sum(axis=2) + bias


if __name__ == "__main__":
    # Small deterministic shapes consistent with the module.
    batch, node_num = 2, 16
    dim_in, dim_out = 8, 8
    embed_dim, cheby_k = 32, 3

    key = jax.random.PRNGKey(0)
    kx, ka, ks, kw, kb = jax.random.split(key, 5)
    x = jax.random.normal(kx, (batch, node_num, dim_in), jnp.float32)
    all_emb = jax.random.normal(ka, (batch, node_num, embed_dim), jnp.float32)
    stock_emb = jax.random.normal(ks, (batch, node_num, embed_dim), jnp.float32)
    # Deterministic parameter init (torch.FloatTensor is uninitialized in the
    # module; we just need fixed synthetic values of the right shapes).
    weights_pool = 0.1 * jax.random.normal(
        kw, (embed_dim, cheby_k, dim_in, dim_out), jnp.float32)
    bias_pool = 0.1 * jax.random.normal(kb, (embed_dim, dim_out), jnp.float32)

    out = dygcn_pallas(x, all_emb, stock_emb, weights_pool, bias_pool, cheby_k)
    out = jax.block_until_ready(out)

    ref = dygcn_ref(x, all_emb, stock_emb, weights_pool, bias_pool, cheby_k)
    assert out.shape == (batch, node_num, dim_out)
    assert jnp.allclose(out, ref, rtol=1e-4, atol=1e-4), (
        float(jnp.max(jnp.abs(out - ref))))
    print("KERNEL_OK")
</pallas_src>

<mosaic_0001>
module attributes {stable_mosaic.version = 11 : i64} {
  func.func @dygcn_kernel(%arg0: i32, %arg1: memref<2x16x8xf32, #tpu.memory_space<vmem>>, %arg2: memref<2x16x32xf32, #tpu.memory_space<vmem>>, %arg3: memref<32x32xf32, #tpu.memory_space<vmem>>, %arg4: memref<24x256xf32, #tpu.memory_space<vmem>>, %arg5: memref<32x8xf32, #tpu.memory_space<vmem>>, %arg6: memref<32x256xf32, #tpu.memory_space<vmem>>, %arg7: memref<256x8xf32, #tpu.memory_space<vmem>>, %arg8: memref<32x8xf32, #tpu.memory_space<vmem>>) attributes {dimension_semantics = [#tpu.dimension_semantics<parallel>], iteration_bounds = array<i64: 1>, scalar_prefetch = 0 : i64, scratch_operands = 0 : i64, tpu.core_type = #tpu.core_type<tc>, window_params = [{transform_indices = @transform_0, window_bounds = array<i64: 2, 16, 8>}, {transform_indices = @transform_1, window_bounds = array<i64: 2, 16, 32>}, {transform_indices = @transform_2, window_bounds = array<i64: 32, 32>}, {pipeline_mode = #tpu.pipeline_mode<synchronous>, transform_indices = @transform_3, window_bounds = array<i64: 24, 256>}, {pipeline_mode = #tpu.pipeline_mode<synchronous>, transform_indices = @transform_4, window_bounds = array<i64: 32, 8>}, {pipeline_mode = #tpu.pipeline_mode<synchronous>, transform_indices = @transform_5, window_bounds = array<i64: 32, 256>}, {pipeline_mode = #tpu.pipeline_mode<synchronous>, transform_indices = @transform_6, window_bounds = array<i64: 256, 8>}, {transform_indices = @transform_7, window_bounds = array<i64: 32, 8>}]} {
    %c0 = arith.constant 0 : index
    %c0_0 = arith.constant 0 : index
    %c0_1 = arith.constant 0 : index
    %0 = vector.load %arg1[%c0, %c0_0, %c0_1] : memref<2x16x8xf32, #tpu.memory_space<vmem>>, vector<2x16x8xf32>
    %c0_2 = arith.constant 0 : index
    %c0_3 = arith.constant 0 : index
    %c0_4 = arith.constant 0 : index
    %1 = vector.load %arg2[%c0_2, %c0_3, %c0_4] : memref<2x16x32xf32, #tpu.memory_space<vmem>>, vector<2x16x32xf32>
    %c0_5 = arith.constant 0 : index
    %c0_6 = arith.constant 0 : index
    %2 = vector.load %arg3[%c0_5, %c0_6] : memref<32x32xf32, #tpu.memory_space<vmem>>, vector<32x32xf32>
    "tpu.trace_start"() <{level = 10 : i32, message = "bne,bme->bnm"}> : () -> ()
    %cst = arith.constant dense<0.000000e+00> : vector<2x16x16xf32>
    %3 = tpu.matmul %1, %1, %cst {dimension_numbers = #tpu.dot_dimension_numbers<[2], [2], [1], [1], [0, 0, 0, 1, 1, 1], [0], [0]>} : vector<2x16x32xf32>, vector<2x16x32xf32>, vector<2x16x16xf32> -> vector<2x16x16xf32>
    "tpu.trace_stop"() : () -> ()
    %cst_7 = arith.constant 0.000000e+00 : f32
    %4 = vector.broadcast %cst_7 : f32 to vector<2x16x16xf32>
    %5 = arith.maximumf %3, %4 : vector<2x16x16xf32>
    %cst_8 = arith.constant dense<0xFF800000> : vector<2x16xf32>
    %6 = vector.multi_reduction <maximumf>, %5, %cst_8 [2] : vector<2x16x16xf32> to vector<2x16xf32>
    %7 = vector.shape_cast %6 : vector<2x16xf32> to vector<2x16x1xf32>
    %8 = vector.broadcast %7 : vector<2x16x1xf32> to vector<2x16x16xf32>
    %9 = arith.subf %5, %8 : vector<2x16x16xf32>
    %10 = math.exp %9 : vector<2x16x16xf32>
    %cst_9 = arith.constant dense<0.000000e+00> : vector<2x16xf32>
    %11 = vector.multi_reduction <add>, %10, %cst_9 [2] : vector<2x16x16xf32> to vector<2x16xf32>
    %12 = vector.shape_cast %11 : vector<2x16xf32> to vector<2x16x1xf32>
    %13 = vector.broadcast %12 : vector<2x16x1xf32> to vector<2x16x16xf32>
    %14 = arith.divf %10, %13 : vector<2x16x16xf32>
    "tpu.trace_start"() <{level = 10 : i32, message = "bnm,bmi->bni"}> : () -> ()
    %cst_10 = arith.constant dense<0.000000e+00> : vector<2x16x8xf32>
    %15 = tpu.matmul %14, %0, %cst_10 {dimension_numbers = #tpu.dot_dimension_numbers<[2], [1], [1], [2], [0, 0, 0, 1, 1, 2], [0], [0]>} : vector<2x16x16xf32>, vector<2x16x8xf32>, vector<2x16x8xf32> -> vector<2x16x8xf32>
    %cst_11 = arith.constant dense<0.000000e+00> : vector<2x16x8xf32>
    %16 = tpu.matmul %14, %15, %cst_11 {dimension_numbers = #tpu.dot_dimension_numbers<[2], [1], [1], [2], [0, 0, 0, 1, 1, 2], [0], [0]>} : vector<2x16x16xf32>, vector<2x16x8xf32>, vector<2x16x8xf32> -> vector<2x16x8xf32>
    "tpu.trace_stop"() : () -> ()
    %cst_12 = arith.constant 2.000000e+00 : f32
    %17 = vector.broadcast %cst_12 : f32 to vector<2x16x8xf32>
    %18 = arith.mulf %17, %16 : vector<2x16x8xf32>
    %19 = arith.subf %18, %0 : vector<2x16x8xf32>
    %cst_13 = arith.constant 0.000000e+00 : f32
    %20 = vector.broadcast %cst_13 : f32 to vector<32x256xf32>
    %21 = vector.shape_cast %0 : vector<2x16x8xf32> to vector<32x8xf32>
    %c0_14 = arith.constant 0 : index
    %c0_15 = arith.constant 0 : index
    %22 = vector.load %arg4[%c0_14, %c0_15] : memref<24x256xf32, #tpu.memory_space<vmem>>, vector<8x256xf32>
    %cst_16 = arith.constant dense<0.000000e+00> : vector<32x256xf32>
    %23 = tpu.matmul %21, %22, %cst_16 {dimension_numbers = #tpu.dot_dimension_numbers<[1], [0], [0], [1], [0, 0, 1, 1], [], []>} : vector<32x8xf32>, vector<8x256xf32>, vector<32x256xf32> -> vector<32x256xf32>
    %24 = arith.addf %20, %23 : vector<32x256xf32>
    %25 = vector.shape_cast %15 : vector<2x16x8xf32> to vector<32x8xf32>
    %c8 = arith.constant 8 : index
    %c0_17 = arith.constant 0 : index
    %26 = vector.load %arg4[%c8, %c0_17] : memref<24x256xf32, #tpu.memory_space<vmem>>, vector<8x256xf32>
    %cst_18 = arith.constant dense<0.000000e+00> : vector<32x256xf32>
    %27 = tpu.matmul %25, %26, %cst_18 {dimension_numbers = #tpu.dot_dimension_numbers<[1], [0], [0], [1], [0, 0, 1, 1], [], []>} : vector<32x8xf32>, vector<8x256xf32>, vector<32x256xf32> -> vector<32x256xf32>
    %28 = arith.addf %24, %27 : vector<32x256xf32>
    %29 = vector.shape_cast %19 : vector<2x16x8xf32> to vector<32x8xf32>
    %c16 = arith.constant 16 : index
    %c0_19 = arith.constant 0 : index
    %30 = vector.load %arg4[%c16, %c0_19] : memref<24x256xf32, #tpu.memory_space<vmem>>, vector<8x256xf32>
    %cst_20 = arith.constant dense<0.000000e+00> : vector<32x256xf32>
    %31 = tpu.matmul %29, %30, %cst_20 {dimension_numbers = #tpu.dot_dimension_numbers<[1], [0], [0], [1], [0, 0, 1, 1], [], []>} : vector<32x8xf32>, vector<8x256xf32>, vector<32x256xf32> -> vector<32x256xf32>
    %32 = arith.addf %28, %31 : vector<32x256xf32>
    %c0_21 = arith.constant 0 : index
    %c0_22 = arith.constant 0 : index
    %33 = vector.load %arg6[%c0_21, %c0_22] : memref<32x256xf32, #tpu.memory_space<vmem>>, vector<32x256xf32>
    %cst_23 = arith.constant dense<0.000000e+00> : vector<32x256xf32>
    %34 = tpu.matmul %2, %33, %cst_23 {dimension_numbers = #tpu.dot_dimension_numbers<[1], [0], [0], [1], [0, 0, 1, 1], [], []>} : vector<32x32xf32>, vector<32x256xf32>, vector<32x256xf32> -> vector<32x256xf32>
    %c0_24 = arith.constant 0 : index
    %c0_25 = arith.constant 0 : index
    %35 = vector.load %arg5[%c0_24, %c0_25] : memref<32x8xf32, #tpu.memory_space<vmem>>, vector<32x8xf32>
    %cst_26 = arith.constant dense<0.000000e+00> : vector<32x8xf32>
    %36 = tpu.matmul %2, %35, %cst_26 {dimension_numbers = #tpu.dot_dimension_numbers<[1], [0], [0], [1], [0, 0, 1, 1], [], []>} : vector<32x32xf32>, vector<32x8xf32>, vector<32x8xf32> -> vector<32x8xf32>
    %37 = arith.mulf %34, %32 : vector<32x256xf32>
    %c0_27 = arith.constant 0 : index
    %c0_28 = arith.constant 0 : index
    %38 = vector.load %arg7[%c0_27, %c0_28] : memref<256x8xf32, #tpu.memory_space<vmem>>, vector<256x8xf32>
    %cst_29 = arith.constant dense<0.000000e+00> : vector<32x8xf32>
    %39 = tpu.matmul %37, %38, %cst_29 {dimension_numbers = #tpu.dot_dimension_numbers<[1], [0], [0], [1], [0, 0, 1, 1], [], []>} : vector<32x256xf32>, vector<256x8xf32>, vector<32x8xf32> -> vector<32x8xf32>
    %40 = arith.addf %39, %36 : vector<32x8xf32>
    %c0_30 = arith.constant 0 : index
    %c0_31 = arith.constant 0 : index
    %41 = vector.load %arg8[%c0_30, %c0_31] : memref<32x8xf32, #tpu.memory_space<vmem>>, vector<32x8xf32>
    tpu.vector_store %arg8[%c0_30, %c0_31], %40 {strides = array<i32>} : memref<32x8xf32, #tpu.memory_space<vmem>>, vector<32x8xf32>,
    return
  }
  func.func @transform_0(%arg0: i32) -> (i32, i32, i32) {
    %c0_i32 = arith.constant 0 : i32
    %c0_i32_0 = arith.constant 0 : i32
    %c0_i32_1 = arith.constant 0 : i32
    return %arg0, %c0_i32, %c0_i32_0 : i32, i32, i32
  }
  func.func @transform_1(%arg0: i32) -> (i32, i32, i32) {
    %c0_i32 = arith.constant 0 : i32
    %c0_i32_0 = arith.constant 0 : i32
    %c0_i32_1 = arith.constant 0 : i32
    return %arg0, %c0_i32, %c0_i32_0 : i32, i32, i32
  }
  func.func @transform_2(%arg0: i32) -> (i32, i32) {
    %c0_i32 = arith.constant 0 : i32
    %c0_i32_0 = arith.constant 0 : i32
    return %arg0, %c0_i32 : i32, i32
  }
  func.func @transform_3(%arg0: i32) -> (i32, i32) {
    %c0_i32 = arith.constant 0 : i32
    %c0_i32_0 = arith.constant 0 : i32
    %c0_i32_1 = arith.constant 0 : i32
    return %c0_i32, %c0_i32_0 : i32, i32
  }
  func.func @transform_4(%arg0: i32) -> (i32, i32) {
    %c0_i32 = arith.constant 0 : i32
    %c0_i32_0 = arith.constant 0 : i32
    %c0_i32_1 = arith.constant 0 : i32
    return %c0_i32, %c0_i32_0 : i32, i32
  }
  func.func @transform_5(%arg0: i32) -> (i32, i32) {
    %c0_i32 = arith.constant 0 : i32
    %c0_i32_0 = arith.constant 0 : i32
    %c0_i32_1 = arith.constant 0 : i32
    return %c0_i32, %c0_i32_0 : i32, i32
  }
  func.func @transform_6(%arg0: i32) -> (i32, i32) {
    %c0_i32 = arith.constant 0 : i32
    %c0_i32_0 = arith.constant 0 : i32
    %c0_i32_1 = arith.constant 0 : i32
    return %c0_i32, %c0_i32_0 : i32, i32
  }
  func.func @transform_7(%arg0: i32) -> (i32, i32) {
    %c0_i32 = arith.constant 0 : i32
    %c0_i32_0 = arith.constant 0 : i32
    return %arg0, %c0_i32 : i32, i32
  }
}

</mosaic_0001>

<llo_original>
// kernel: tpu_custom_call.1
$region0: #{tpu_custom_call.1}
  #allocation0 [shape = 'u32[]', space=smem, size = 0x4, offset = 0x4, fixed_abs, tag = 'smem constant byte address 0x4 - core index']
  #allocation1 [shape = 'u32[144,128]{1,0:T(1,128)}', space=vmem, size = 0x12000, scoped, tag = 'internal scratch']
  %s0 = inlined_call_operand.vmem [shape: f32[2,16,8], index: 0, kind: input, shape index: {}]
  %s1 = inlined_call_operand.vmem [shape: f32[2,16,32], index: 1, kind: input, shape index: {}]
  %s2 = inlined_call_operand.vmem [shape: f32[32,32], index: 2, kind: input, shape index: {}]
  %s3 = inlined_call_operand.vmem [shape: f32[24,256], index: 3, kind: input, shape index: {}]
  %s4 = inlined_call_operand.vmem [shape: f32[32,8], index: 4, kind: input, shape index: {}]
  %s5 = inlined_call_operand.vmem [shape: f32[32,256], index: 5, kind: input, shape index: {}]
  %s6 = inlined_call_operand.vmem [shape: f32[256,8], index: 6, kind: input, shape index: {}]
  %s7 = inlined_call_operand.vmem [shape: f32[32,8], index: 7, kind: output, shape index: {}]
  %s8 = sld [smem:[#allocation0]]
  $region38: #{tpu_custom_call.1} parent=0
    _
  %s10 = ssub.s32 1, %s8
  %s11 = scalar_select 0, %s10, %s8
  // Predicated region
  $region2: #{tpu_custom_call.1} parent=0 // pred_check
    _
  $region3: #{tpu_custom_call.1} parent=0 // pred_check_branch
    %13 = sbr.rel (0) target = $region5
  $region4: #{tpu_custom_call.1} parent=0 // pred_region
    _
  $region5: #{tpu_custom_call.1} parent=0 // pred_fallthru
    _
  // Predicated region
  $region6: #{tpu_custom_call.1} parent=0 // pred_check
    _
  $region7: #{tpu_custom_call.1} parent=0 // pred_check_branch
    %15 = sbr.rel (0) target = $region9
  $region8: #{tpu_custom_call.1} parent=0 // pred_region
    _
  $region9: #{tpu_custom_call.1} parent=0 // pred_fallthru
    _
  // Predicated region
  $region10: #{tpu_custom_call.1} parent=0 // pred_check
    _
  $region11: #{tpu_custom_call.1} parent=0 // pred_check_branch
    %17 = sbr.rel (0) target = $region13
  $region12: #{tpu_custom_call.1} parent=0 // pred_region
    _
  $region13: #{tpu_custom_call.1} parent=0 // pred_fallthru
    _
  // Predicated region
  $region14: #{tpu_custom_call.1} parent=0 // pred_check
    _
  $region15: #{tpu_custom_call.1} parent=0 // pred_check_branch
    %19 = sbr.rel (0) target = $region17
  $region16: #{tpu_custom_call.1} parent=0 // pred_region
    _
  $region17: #{tpu_custom_call.1} parent=0 // pred_fallthru
    _
  // Predicated region
  $region18: #{tpu_custom_call.1} parent=0 // pred_check
    _
  $region19: #{tpu_custom_call.1} parent=0 // pred_check_branch
    %21 = sbr.rel (0) target = $region21
  $region20: #{tpu_custom_call.1} parent=0 // pred_region
    _
  $region21: #{tpu_custom_call.1} parent=0 // pred_fallthru
    _
  // Predicated region
  $region22: #{tpu_custom_call.1} parent=0 // pred_check
    _
  $region23: #{tpu_custom_call.1} parent=0 // pred_check_branch
    %23 = sbr.rel (0) target = $region25
  $region24: #{tpu_custom_call.1} parent=0 // pred_region
    _
  $region25: #{tpu_custom_call.1} parent=0 // pred_fallthru
    _
  // Predicated region
  $region26: #{tpu_custom_call.1} parent=0 // pred_check
    _
  $region27: #{tpu_custom_call.1} parent=0 // pred_check_branch
    %25 = sbr.rel (0) target = $region29
  $region28: #{tpu_custom_call.1} parent=0 // pred_region
    _
  $region29: #{tpu_custom_call.1} parent=0 // pred_fallthru
    _
  %v26 = vld [vmem:[%s0] sm:$0xff]
  %v27 = vld [vmem:[%s0 + $0x8] sm:$0xff]
  %v28 = vld [vmem:[%s0 + $0x10] sm:$0xff]
  %v29 = vld [vmem:[%s0 + $0x18] sm:$0xff]
  %v30 = vld [vmem:[%s1] sm:$0xff]
  %v31 = vld [vmem:[%s1 + $0x8] sm:$0xff]
  %v32 = vld [vmem:[%s1 + $0x10] sm:$0xff]
  %v33 = vld [vmem:[%s1 + $0x18] sm:$0xff]
  %v34 = vld [vmem:[%s2] sm:$0xff]
  %v35 = vld [vmem:[%s2 + $0x8] sm:$0xff]
  %v36 = vld [vmem:[%s2 + $0x10] sm:$0xff]
  %v37 = vld [vmem:[%s2 + $0x18] sm:$0xff]
  %vm38 = vcmask 261120
  %v40 = vsel %vm38, %v30, 0
  %v43 = vsel %vm38, %v31, 0
  %45 = vmatprep.subr.mxu0 0.0
  %46 = vmatpush1.xpose.msra.mxu0 %v40
  %47 = vmatprep.subr.mxu0 0.0
  %48 = vmatpush1.xpose.msra.mxu0 %v43
  %49 = vmatprep.subr.mxu0 0.0
  %50 = vmatpush1.xpose.msra.mxu0 0.0
  %51 = vmatprep.subr.mxu0 0.0
  %52 = vmatpush1.xpose.msra.mxu0 0.0
  %53 = vmatprep.subr.mxu0 0.0
  %54 = vmatpush1.xpose.msra.mxu0 0.0
  %55 = vmatprep.subr.mxu0 0.0
  %56 = vmatpush1.xpose.msra.mxu0 0.0
  %57 = vmatprep.subr.mxu0 0.0
  %58 = vmatpush1.xpose.msra.mxu0 0.0
  %59 = vmatprep.subr.mxu0 0.0
  %60 = vmatpush1.xpose.msra.mxu0 0.0
  %61 = vmatprep.subr.mxu0 0.0
  %62 = vmatpush1.xpose.msra.mxu0 0.0
  %63 = vmatprep.subr.mxu0 0.0
  %64 = vmatpush1.xpose.msra.mxu0 0.0
  %65 = vmatprep.subr.mxu0 0.0
  %66 = vmatpush1.xpose.msra.mxu0 0.0
  %67 = vmatprep.subr.mxu0 0.0
  %68 = vmatpush1.xpose.msra.mxu0 0.0
  %69 = vmatprep.subr.mxu0 0.0
  %70 = vmatpush1.xpose.msra.mxu0 0.0
  %71 = vmatprep.subr.mxu0 0.0
  %72 = vmatpush1.xpose.msra.mxu0 0.0
  %73 = vmatprep.subr.mxu0 0.0
  %74 = vmatpush1.xpose.msra.mxu0 0.0
  %75 = vmatprep.subr.mxu0 0.0
  %76 = vmatpush1.xpose.msra.mxu0 0.0
  %77 = vmatprep.subr.mxu0 0.0
  %78 = vmatpush1.xpose.msra.mxu0 0.0
  %79 = vmatprep.subr.mxu0 0.0
  %80 = vmatpush1.xpose.msra.mxu0 0.0
  %81 = vmatprep.subr.mxu0 0.0
  %82 = vmatpush1.xpose.msra.mxu0 0.0
  %83 = vmatprep.subr.mxu0 0.0
  %84 = vmatpush1.xpose.msra.mxu0 0.0
  %85 = vmatprep.subr.mxu0 0.0
  %86 = vmatpush1.xpose.msra.mxu0 0.0
  %87 = vmatprep.subr.mxu0 0.0
  %88 = vmatpush1.xpose.msra.mxu0 0.0
  %89 = vmatprep.subr.mxu0 0.0
  %90 = vmatpush1.xpose.msra.mxu0 0.0
  %91 = vmatprep.subr.mxu0 0.0
  %92 = vmatpush1.xpose.msra.mxu0 0.0
  %93 = vmatprep.subr.mxu0 0.0
  %94 = vmatpush1.xpose.msra.mxu0 0.0
  %95 = vmatprep.subr.mxu0 0.0
  %96 = vmatpush1.xpose.msra.mxu0 0.0
  %97 = vmatprep.subr.mxu0 0.0
  %98 = vmatpush1.xpose.msra.mxu0 0.0
  %99 = vmatprep.subr.mxu0 0.0
  %100 = vmatpush1.xpose.msra.mxu0 0.0
  %101 = vmatprep.subr.mxu0 0.0
  %102 = vmatpush1.xpose.msra.mxu0 0.0
  %103 = vmatprep.subr.mxu0 0.0
  %104 = vmatpush1.xpose.msra.mxu0 0.0
  %105 = vmatprep.subr.mxu0 0.0
  %106 = vmatpush1.xpose.msra.mxu0 0.0
  %107 = vmatprep.subr.mxu0 0.0
  %108 = vmatpush1.xpose.msra.mxu0 0.0
  %109 = vmatprep.mubr.f32.mxu0 0.0
  %110 = vmatmul.mubr.f32.gmra.mrb[0].mxu0 %v40
  %v111 = vpop.f32.mrb[0].mxu0
  %v112 = vadd.f32 0.0, %v111
  %v113 = vpop.f32.mrb[0].mxu0
  %114 = vmatprep.mubr.f32.mxu0 0.0
  %115 = vmatmul.mubr.f32.gmra.mrb[0].mxu0 %v43
  %v116 = vpop.f32.mrb[0].mxu0
  %v117 = vadd.f32 0.0, %v116
  %v118 = vpop.f32.mrb[0].mxu0
  %119 = vdwg.mxu0
  %v121 = vsel %vm38, %v32, 0
  %v124 = vsel %vm38, %v33, 0
  %126 = vmatprep.subr.mxu0 0.0
  %127 = vmatpush1.xpose.msra.mxu0 %v121
  %128 = vmatprep.subr.mxu0 0.0
  %129 = vmatpush1.xpose.msra.mxu0 %v124
  %130 = vmatprep.subr.mxu0 0.0
  %131 = vmatpush1.xpose.msra.mxu0 0.0
  %132 = vmatprep.subr.mxu0 0.0
  %133 = vmatpush1.xpose.msra.mxu0 0.0
  %134 = vmatprep.subr.mxu0 0.0
  %135 = vmatpush1.xpose.msra.mxu0 0.0
  %136 = vmatprep.subr.mxu0 0.0
  %137 = vmatpush1.xpose.msra.mxu0 0.0
  %138 = vmatprep.subr.mxu0 0.0
  %139 = vmatpush1.xpose.msra.mxu0 0.0
  %140 = vmatprep.subr.mxu0 0.0
  %141 = vmatpush1.xpose.msra.mxu0 0.0
  %142 = vmatprep.subr.mxu0 0.0
  %143 = vmatpush1.xpose.msra.mxu0 0.0
  %144 = vmatprep.subr.mxu0 0.0
  %145 = vmatpush1.xpose.msra.mxu0 0.0
  %146 = vmatprep.subr.mxu0 0.0
  %147 = vmatpush1.xpose.msra.mxu0 0.0
  %148 = vmatprep.subr.mxu0 0.0
  %149 = vmatpush1.xpose.msra.mxu0 0.0
  %150 = vmatprep.subr.mxu0 0.0
  %151 = vmatpush1.xpose.msra.mxu0 0.0
  %152 = vmatprep.subr.mxu0 0.0
  %153 = vmatpush1.xpose.msra.mxu0 0.0
  %154 = vmatprep.subr.mxu0 0.0
  %155 = vmatpush1.xpose.msra.mxu0 0.0
  %156 = vmatprep.subr.mxu0 0.0
  %157 = vmatpush1.xpose.msra.mxu0 0.0
  %158 = vmatprep.subr.mxu0 0.0
  %159 = vmatpush1.xpose.msra.mxu0 0.0
  %160 = vmatprep.subr.mxu0 0.0
  %161 = vmatpush1.xpose.msra.mxu0 0.0
  %162 = vmatprep.subr.mxu0 0.0
  %163 = vmatpush1.xpose.msra.mxu0 0.0
  %164 = vmatprep.subr.mxu0 0.0
  %165 = vmatpush1.xpose.msra.mxu0 0.0
  %166 = vmatprep.subr.mxu0 0.0
  %167 = vmatpush1.xpose.msra.mxu0 0.0
  %168 = vmatprep.subr.mxu0 0.0
  %169 = vmatpush1.xpose.msra.mxu0 0.0
  %170 = vmatprep.subr.mxu0 0.0
  %171 = vmatpush1.xpose.msra.mxu0 0.0
  %172 = vmatprep.subr.mxu0 0.0
  %173 = vmatpush1.xpose.msra.mxu0 0.0
  %174 = vmatprep.subr.mxu0 0.0
  %175 = vmatpush1.xpose.msra.mxu0 0.0
  %176 = vmatprep.subr.mxu0 0.0
  %177 = vmatpush1.xpose.msra.mxu0 0.0
  %178 = vmatprep.subr.mxu0 0.0
  %179 = vmatpush1.xpose.msra.mxu0 0.0
  %180 = vmatprep.subr.mxu0 0.0
  %181 = vmatpush1.xpose.msra.mxu0 0.0
  %182 = vmatprep.subr.mxu0 0.0
  %183 = vmatpush1.xpose.msra.mxu0 0.0
  %184 = vmatprep.subr.mxu0 0.0
  %185 = vmatpush1.xpose.msra.mxu0 0.0
  %186 = vmatprep.subr.mxu0 0.0
  %187 = vmatpush1.xpose.msra.mxu0 0.0
  %188 = vmatprep.subr.mxu0 0.0
  %189 = vmatpush1.xpose.msra.mxu0 0.0
  %190 = vmatprep.mubr.f32.mxu0 0.0
  %191 = vmatmul.mubr.f32.gmra.mrb[0].mxu0 %v121
  %v192 = vpop.f32.mrb[0].mxu0
  %v193 = vadd.f32 0.0, %v192
  %v194 = vpop.f32.mrb[0].mxu0
  %195 = vmatprep.mubr.f32.mxu0 0.0
  %196 = vmatmul.mubr.f32.gmra.mrb[0].mxu0 %v124
  %v197 = vpop.f32.mrb[0].mxu0
  %v198 = vadd.f32 0.0, %v197
  %v199 = vpop.f32.mrb[0].mxu0
  %200 = vdwg.mxu0
  %v201 = vmax.f32 %v112, 0.0
  %v202 = vmax.f32 %v117, 0.0
  %v203 = vmax.f32 %v193, 0.0
  %v204 = vmax.f32 %v198, 0.0
  %vm205 = vcmask 130048
  %v206 = vsel %vm205, %v201, -inf
  %207 = vmax.xlane.f32.xlu0 %v206
  %v208 = vpop.xlane.xlu0 %207
  %v209 = vsel %vm205, %v202, -inf
  %210 = vmax.xlane.f32.xlu0 %v209
  %v211 = vpop.xlane.xlu0 %210
  %v212 = vsel %vm205, %v203, -inf
  %213 = vmax.xlane.f32.xlu0 %v212
  %v214 = vpop.xlane.xlu0 %213
  %v215 = vsel %vm205, %v204, -inf
  %216 = vmax.xlane.f32.xlu0 %v215
  %v217 = vpop.xlane.xlu0 %216
  %v218 = vsub.f32 %v201, %v208
  %v219 = vsub.f32 %v202, %v211
  %v220 = vsub.f32 %v203, %v214
  %v221 = vsub.f32 %v204, %v217
  %v222 = vmul.f32 %v218, 1.442695
  %v223 = vpow.pop %v222
  %v224 = vmul.f32 %v219, 1.442695
  %v225 = vpow.pop %v224
  %v226 = vmul.f32 %v220, 1.442695
  %v227 = vpow.pop %v226
  %v228 = vmul.f32 %v221, 1.442695
  %v229 = vpow.pop %v228
  %v230 = vsel %vm205, %v223, 0.0
  %231 = vadd.xlane.f32.xlu0 %v230
  %v232 = vpop.xlane.xlu0 %231
  %v233 = vsel %vm205, %v225, 0.0
  %234 = vadd.xlane.f32.xlu0 %v233
  %v235 = vpop.xlane.xlu0 %234
  %v236 = vsel %vm205, %v227, 0.0
  %237 = vadd.xlane.f32.xlu0 %v236
  %v238 = vpop.xlane.xlu0 %237
  %v239 = vsel %vm205, %v229, 0.0
  %240 = vadd.xlane.f32.xlu0 %v239
  %v241 = vpop.xlane.xlu0 %240
  %v242 = vrcp.pop %v232
  %v243 = vmul.f32 %v223, %v242
  %v244 = vrcp.pop %v235
  %v245 = vmul.f32 %v225, %v244
  %v246 = vrcp.pop %v238
  %v247 = vmul.f32 %v227, %v246
  %v248 = vrcp.pop %v241
  %v249 = vmul.f32 %v229, %v248
  %v251 = vsel %vm205, %v243, 0
  %v254 = vsel %vm205, %v245, 0
  %256 = vmatprep.subr.mxu0 0.0
  %257 = vmatpush1.msra.mxu0 %v26
  %258 = vmatprep.subr.mxu0 0.0
  %259 = vmatpush1.msra.mxu0 %v27
  %260 = vmatprep.subr.mxu0 0.0
  %261 = vmatpush1.msra.mxu0 0.0
  %262 = vmatprep.subr.mxu0 0.0
  %263 = vmatpush1.msra.mxu0 0.0
  %264 = vmatprep.subr.mxu0 0.0
  %265 = vmatpush1.msra.mxu0 0.0
  %266 = vmatprep.subr.mxu0 0.0
  %267 = vmatpush1.msra.mxu0 0.0
  %268 = vmatprep.subr.mxu0 0.0
  %269 = vmatpush1.msra.mxu0 0.0
  %270 = vmatprep.subr.mxu0 0.0
  %271 = vmatpush1.msra.mxu0 0.0
  %272 = vmatprep.subr.mxu0 0.0
  %273 = vmatpush1.msra.mxu0 0.0
  %274 = vmatprep.subr.mxu0 0.0
  %275 = vmatpush1.msra.mxu0 0.0
  %276 = vmatprep.subr.mxu0 0.0
  %277 = vmatpush1.msra.mxu0 0.0
  %278 = vmatprep.subr.mxu0 0.0
  %279 = vmatpush1.msra.mxu0 0.0
  %280 = vmatprep.subr.mxu0 0.0
  %281 = vmatpush1.msra.mxu0 0.0
  %282 = vmatprep.subr.mxu0 0.0
  %283 = vmatpush1.msra.mxu0 0.0
  %284 = vmatprep.subr.mxu0 0.0
  %285 = vmatpush1.msra.mxu0 0.0
  %286 = vmatprep.subr.mxu0 0.0
  %287 = vmatpush1.msra.mxu0 0.0
  %288 = vmatprep.subr.mxu0 0.0
  %289 = vmatpush1.msra.mxu0 0.0
  %290 = vmatprep.subr.mxu0 0.0
  %291 = vmatpush1.msra.mxu0 0.0
  %292 = vmatprep.subr.mxu0 0.0
  %293 = vmatpush1.msra.mxu0 0.0
  %294 = vmatprep.subr.mxu0 0.0
  %295 = vmatpush1.msra.mxu0 0.0
  %296 = vmatprep.subr.mxu0 0.0
  %297 = vmatpush1.msra.mxu0 0.0
  %298 = vmatprep.subr.mxu0 0.0
  %299 = vmatpush1.msra.mxu0 0.0
  %300 = vmatprep.subr.mxu0 0.0
  %301 = vmatpush1.msra.mxu0 0.0
  %302 = vmatprep.subr.mxu0 0.0
  %303 = vmatpush1.msra.mxu0 0.0
  %304 = vmatprep.subr.mxu0 0.0
  %305 = vmatpush1.msra.mxu0 0.0
  %306 = vmatprep.subr.mxu0 0.0
  %307 = vmatpush1.msra.mxu0 0.0
  %308 = vmatprep.subr.mxu0 0.0
  %309 = vmatpush1.msra.mxu0 0.0
  %310 = vmatprep.subr.mxu0 0.0
  %311 = vmatpush1.msra.mxu0 0.0
  %312 = vmatprep.subr.mxu0 0.0
  %313 = vmatpush1.msra.mxu0 0.0
  %314 = vmatprep.subr.mxu0 0.0
  %315 = vmatpush1.msra.mxu0 0.0
  %316 = vmatprep.subr.mxu0 0.0
  %317 = vmatpush1.msra.mxu0 0.0
  %318 = vmatprep.subr.mxu0 0.0
  %319 = vmatpush1.msra.mxu0 0.0
  %320 = vmatprep.mubr.f32.mxu0 0.0
  %321 = vmatmul.mubr.f32.gmra.mrb[0].mxu0 %v251
  %v322 = vpop.f32.mrb[0].mxu0
  %v323 = vadd.f32 0.0, %v322
  %v324 = vpop.f32.mrb[0].mxu0
  %325 = vmatprep.mubr.f32.mxu0 0.0
  %326 = vmatmul.mubr.f32.gmra.mrb[0].mxu0 %v254
  %v327 = vpop.f32.mrb[0].mxu0
  %v328 = vadd.f32 0.0, %v327
  %v329 = vpop.f32.mrb[0].mxu0
  %330 = vdwg.mxu0
  %v332 = vsel %vm205, %v247, 0
  %v335 = vsel %vm205, %v249, 0
  %337 = vmatprep.subr.mxu0 0.0
  %338 = vmatpush1.msra.mxu0 %v28
  %339 = vmatprep.subr.mxu0 0.0
  %340 = vmatpush1.msra.mxu0 %v29
  %341 = vmatprep.subr.mxu0 0.0
  %342 = vmatpush1.msra.mxu0 0.0
  %343 = vmatprep.subr.mxu0 0.0
  %344 = vmatpush1.msra.mxu0 0.0
  %345 = vmatprep.subr.mxu0 0.0
  %346 = vmatpush1.msra.mxu0 0.0
  %347 = vmatprep.subr.mxu0 0.0
  %348 = vmatpush1.msra.mxu0 0.0
  %349 = vmatprep.subr.mxu0 0.0
  %350 = vmatpush1.msra.mxu0 0.0
  %351 = vmatprep.subr.mxu0 0.0
  %352 = vmatpush1.msra.mxu0 0.0
  %353 = vmatprep.subr.mxu0 0.0
  %354 = vmatpush1.msra.mxu0 0.0
  %355 = vmatprep.subr.mxu0 0.0
  %356 = vmatpush1.msra.mxu0 0.0
  %357 = vmatprep.subr.mxu0 0.0
  %358 = vmatpush1.msra.mxu0 0.0
  %359 = vmatprep.subr.mxu0 0.0
  %360 = vmatpush1.msra.mxu0 0.0
  %361 = vmatprep.subr.mxu0 0.0
  %362 = vmatpush1.msra.mxu0 0.0
  %363 = vmatprep.subr.mxu0 0.0
  %364 = vmatpush1.msra.mxu0 0.0
  %365 = vmatprep.subr.mxu0 0.0
  %366 = vmatpush1.msra.mxu0 0.0
  %367 = vmatprep.subr.mxu0 0.0
  %368 = vmatpush1.msra.mxu0 0.0
  %369 = vmatprep.subr.mxu0 0.0
  %370 = vmatpush1.msra.mxu0 0.0
  %371 = vmatprep.subr.mxu0 0.0
  %372 = vmatpush1.msra.mxu0 0.0
  %373 = vmatprep.subr.mxu0 0.0
  %374 = vmatpush1.msra.mxu0 0.0
  %375 = vmatprep.subr.mxu0 0.0
  %376 = vmatpush1.msra.mxu0 0.0
  %377 = vmatprep.subr.mxu0 0.0
  %378 = vmatpush1.msra.mxu0 0.0
  %379 = vmatprep.subr.mxu0 0.0
  %380 = vmatpush1.msra.mxu0 0.0
  %381 = vmatprep.subr.mxu0 0.0
  %382 = vmatpush1.msra.mxu0 0.0
  %383 = vmatprep.subr.mxu0 0.0
  %384 = vmatpush1.msra.mxu0 0.0
  %385 = vmatprep.subr.mxu0 0.0
  %386 = vmatpush1.msra.mxu0 0.0
  %387 = vmatprep.subr.mxu0 0.0
  %388 = vmatpush1.msra.mxu0 0.0
  %389 = vmatprep.subr.mxu0 0.0
  %390 = vmatpush1.msra.mxu0 0.0
  %391 = vmatprep.subr.mxu0 0.0
  %392 = vmatpush1.msra.mxu0 0.0
  %393 = vmatprep.subr.mxu0 0.0
  %394 = vmatpush1.msra.mxu0 0.0
  %395 = vmatprep.subr.mxu0 0.0
  %396 = vmatpush1.msra.mxu0 0.0
  %397 = vmatprep.subr.mxu0 0.0
  %398 = vmatpush1.msra.mxu0 0.0
  %399 = vmatprep.subr.mxu0 0.0
  %400 = vmatpush1.msra.mxu0 0.0
  %401 = vmatprep.mubr.f32.mxu0 0.0
  %402 = vmatmul.mubr.f32.gmra.mrb[0].mxu0 %v332
  %v403 = vpop.f32.mrb[0].mxu0
  %v404 = vadd.f32 0.0, %v403
  %v405 = vpop.f32.mrb[0].mxu0
  %406 = vmatprep.mubr.f32.mxu0 0.0
  %407 = vmatmul.mubr.f32.gmra.mrb[0].mxu0 %v335
  %v408 = vpop.f32.mrb[0].mxu0
  %v409 = vadd.f32 0.0, %v408
  %v410 = vpop.f32.mrb[0].mxu0
  %411 = vdwg.mxu0
  %412 = vmatprep.subr.mxu0 0.0
  %413 = vmatpush1.msra.mxu0 %v323
  %414 = vmatprep.subr.mxu0 0.0
  %415 = vmatpush1.msra.mxu0 %v328
  %416 = vmatprep.subr.mxu0 0.0
  %417 = vmatpush1.msra.mxu0 0.0
  %418 = vmatprep.subr.mxu0 0.0
  %419 = vmatpush1.msra.mxu0 0.0
  %420 = vmatprep.subr.mxu0 0.0
  %421 = vmatpush1.msra.mxu0 0.0
  %422 = vmatprep.subr.mxu0 0.0
  %423 = vmatpush1.msra.mxu0 0.0
  %424 = vmatprep.subr.mxu0 0.0
  %425 = vmatpush1.msra.mxu0 0.0
  %426 = vmatprep.subr.mxu0 0.0
  %427 = vmatpush1.msra.mxu0 0.0
  %428 = vmatprep.subr.mxu0 0.0
  %429 = vmatpush1.msra.mxu0 0.0
  %430 = vmatprep.subr.mxu0 0.0
  %431 = vmatpush1.msra.mxu0 0.0
  %432 = vmatprep.subr.mxu0 0.0
  %433 = vmatpush1.msra.mxu0 0.0
  %434 = vmatprep.subr.mxu0 0.0
  %435 = vmatpush1.msra.mxu0 0.0
  %436 = vmatprep.subr.mxu0 0.0
  %437 = vmatpush1.msra.mxu0 0.0
  %438 = vmatprep.subr.mxu0 0.0
  %439 = vmatpush1.msra.mxu0 0.0
  %440 = vmatprep.subr.mxu0 0.0
  %441 = vmatpush1.msra.mxu0 0.0
  %442 = vmatprep.subr.mxu0 0.0
  %443 = vmatpush1.msra.mxu0 0.0
  %444 = vmatprep.subr.mxu0 0.0
  %445 = vmatpush1.msra.mxu0 0.0
  %446 = vmatprep.subr.mxu0 0.0
  %447 = vmatpush1.msra.mxu0 0.0
  %448 = vmatprep.subr.mxu0 0.0
  %449 = vmatpush1.msra.mxu0 0.0
  %450 = vmatprep.subr.mxu0 0.0
  %451 = vmatpush1.msra.mxu0 0.0
  %452 = vmatprep.subr.mxu0 0.0
  %453 = vmatpush1.msra.mxu0 0.0
  %454 = vmatprep.subr.mxu0 0.0
  %455 = vmatpush1.msra.mxu0 0.0
  %456 = vmatprep.subr.mxu0 0.0
  %457 = vmatpush1.msra.mxu0 0.0
  %458 = vmatprep.subr.mxu0 0.0
  %459 = vmatpush1.msra.mxu0 0.0
  %460 = vmatprep.subr.mxu0 0.0
  %461 = vmatpush1.msra.mxu0 0.0
  %462 = vmatprep.subr.mxu0 0.0
  %463 = vmatpush1.msra.mxu0 0.0
  %464 = vmatprep.subr.mxu0 0.0
  %465 = vmatpush1.msra.mxu0 0.0
  %466 = vmatprep.subr.mxu0 0.0
  %467 = vmatpush1.msra.mxu0 0.0
  %468 = vmatprep.subr.mxu0 0.0
  %469 = vmatpush1.msra.mxu0 0.0
  %470 = vmatprep.subr.mxu0 0.0
  %471 = vmatpush1.msra.mxu0 0.0
  %472 = vmatprep.subr.mxu0 0.0
  %473 = vmatpush1.msra.mxu0 0.0
  %474 = vmatprep.subr.mxu0 0.0
  %475 = vmatpush1.msra.mxu0 0.0
  %476 = vmatprep.mubr.f32.mxu0 0.0
  %477 = vmatmul.mubr.f32.gmra.mrb[0].mxu0 %v251
  %v478 = vpop.f32.mrb[0].mxu0
  %v479 = vadd.f32 0.0, %v478
  %v480 = vpop.f32.mrb[0].mxu0
  %481 = vmatprep.mubr.f32.mxu0 0.0
  %482 = vmatmul.mubr.f32.gmra.mrb[0].mxu0 %v254
  %v483 = vpop.f32.mrb[0].mxu0
  %v484 = vadd.f32 0.0, %v483
  %v485 = vpop.f32.mrb[0].mxu0
  %486 = vdwg.mxu0
  %487 = vmatprep.subr.mxu0 0.0
  %488 = vmatpush1.msra.mxu0 %v404
  %489 = vmatprep.subr.mxu0 0.0
  %490 = vmatpush1.msra.mxu0 %v409
  %491 = vmatprep.subr.mxu0 0.0
  %492 = vmatpush1.msra.mxu0 0.0
  %493 = vmatprep.subr.mxu0 0.0
  %494 = vmatpush1.msra.mxu0 0.0
  %495 = vmatprep.subr.mxu0 0.0
  %496 = vmatpush1.msra.mxu0 0.0
  %497 = vmatprep.subr.mxu0 0.0
  %498 = vmatpush1.msra.mxu0 0.0
  %499 = vmatprep.subr.mxu0 0.0
  %500 = vmatpush1.msra.mxu0 0.0
  %501 = vmatprep.subr.mxu0 0.0
  %502 = vmatpush1.msra.mxu0 0.0
  %503 = vmatprep.subr.mxu0 0.0
  %504 = vmatpush1.msra.mxu0 0.0
  %505 = vmatprep.subr.mxu0 0.0
  %506 = vmatpush1.msra.mxu0 0.0
  %507 = vmatprep.subr.mxu0 0.0
  %508 = vmatpush1.msra.mxu0 0.0
  %509 = vmatprep.subr.mxu0 0.0
  %510 = vmatpush1.msra.mxu0 0.0
  %511 = vmatprep.subr.mxu0 0.0
  %512 = vmatpush1.msra.mxu0 0.0
  %513 = vmatprep.subr.mxu0 0.0
  %514 = vmatpush1.msra.mxu0 0.0
  %515 = vmatprep.subr.mxu0 0.0
  %516 = vmatpush1.msra.mxu0 0.0
  %517 = vmatprep.subr.mxu0 0.0
  %518 = vmatpush1.msra.mxu0 0.0
  %519 = vmatprep.subr.mxu0 0.0
  %520 = vmatpush1.msra.mxu0 0.0
  %521 = vmatprep.subr.mxu0 0.0
  %522 = vmatpush1.msra.mxu0 0.0
  %523 = vmatprep.subr.mxu0 0.0
  %524 = vmatpush1.msra.mxu0 0.0
  %525 = vmatprep.subr.mxu0 0.0
  %526 = vmatpush1.msra.mxu0 0.0
  %527 = vmatprep.subr.mxu0 0.0
  %528 = vmatpush1.msra.mxu0 0.0
  %529 = vmatprep.subr.mxu0 0.0
  %530 = vmatpush1.msra.mxu0 0.0
  %531 = vmatprep.subr.mxu0 0.0
  %532 = vmatpush1.msra.mxu0 0.0
  %533 = vmatprep.subr.mxu0 0.0
  %534 = vmatpush1.msra.mxu0 0.0
  %535 = vmatprep.subr.mxu0 0.0
  %536 = vmatpush1.msra.mxu0 0.0
  %537 = vmatprep.subr.mxu0 0.0
  %538 = vmatpush1.msra.mxu0 0.0
  %539 = vmatprep.subr.mxu0 0.0
  %540 = vmatpush1.msra.mxu0 0.0
  %541 = vmatprep.subr.mxu0 0.0
  %542 = vmatpush1.msra.mxu0 0.0
  %543 = vmatprep.subr.mxu0 0.0
  %544 = vmatpush1.msra.mxu0 0.0
  %545 = vmatprep.subr.mxu0 0.0
  %546 = vmatpush1.msra.mxu0 0.0
  %547 = vmatprep.subr.mxu0 0.0
  %548 = vmatpush1.msra.mxu0 0.0
  %549 = vmatprep.subr.mxu0 0.0
  %550 = vmatpush1.msra.mxu0 0.0
  %551 = vmatprep.mubr.f32.mxu0 0.0
  %552 = vmatmul.mubr.f32.gmra.mrb[0].mxu0 %v332
  %v553 = vpop.f32.mrb[0].mxu0
  %v554 = vadd.f32 0.0, %v553
  %v555 = vpop.f32.mrb[0].mxu0
  %556 = vmatprep.mubr.f32.mxu0 0.0
  %557 = vmatmul.mubr.f32.gmra.mrb[0].mxu0 %v335
  %v558 = vpop.f32.mrb[0].mxu0
  %v559 = vadd.f32 0.0, %v558
  %v560 = vpop.f32.mrb[0].mxu0
  %561 = vdwg.mxu0
  %v562 = vmul.f32 %v479, 2.0
  %v563 = vmul.f32 %v484, 2.0
  %v564 = vmul.f32 %v554, 2.0
  %v565 = vmul.f32 %v559, 2.0
  %v566 = vsub.f32 %v562, %v26
  %v567 = vsub.f32 %v563, %v27
  %v568 = vsub.f32 %v564, %v28
  %v569 = vsub.f32 %v565, %v29
  %v570 = vld [vmem:[%s3] sm:$0xff]
  %v571 = vld [vmem:[%s3 + $0x8] sm:$0xff]
  %v572 = vld [vmem:[%s3 + $0x10] sm:$0xff]
  %v573 = vld [vmem:[%s3 + $0x18] sm:$0xff]
  %vm574 = vcmask 64512
  %v576 = vsel %vm574, %v323, 0
  %v579 = vsel %vm574, %v328, 0
  %v582 = vsel %vm574, %v404, 0
  %v585 = vsel %vm574, %v409, 0
  %587 = vmatprep.subr.mxu0 %v573
  %588 = vmatpush1.msra.mxu0 %v572
  %589 = vmatprep.subr.mxu0 0.0
  %590 = vmatpush1.msra.mxu0 0.0
  %591 = vmatprep.subr.mxu0 0.0
  %592 = vmatpush1.msra.mxu0 0.0
  %593 = vmatprep.subr.mxu0 0.0
  %594 = vmatpush1.msra.mxu0 0.0
  %595 = vmatprep.subr.mxu0 0.0
  %596 = vmatpush1.msra.mxu0 0.0
  %597 = vmatprep.subr.mxu0 0.0
  %598 = vmatpush1.msra.mxu0 0.0
  %599 = vmatprep.subr.mxu0 0.0
  %600 = vmatpush1.msra.mxu0 0.0
  %601 = vmatprep.subr.mxu0 0.0
  %602 = vmatpush1.msra.mxu0 0.0
  %603 = vmatprep.subr.mxu0 0.0
  %604 = vmatpush1.msra.mxu0 0.0
  %605 = vmatprep.subr.mxu0 0.0
  %606 = vmatpush1.msra.mxu0 0.0
  %607 = vmatprep.subr.mxu0 0.0
  %608 = vmatpush1.msra.mxu0 0.0
  %609 = vmatprep.subr.mxu0 0.0
  %610 = vmatpush1.msra.mxu0 0.0
  %611 = vmatprep.subr.mxu0 0.0
  %612 = vmatpush1.msra.mxu0 0.0
  %613 = vmatprep.subr.mxu0 0.0
  %614 = vmatpush1.msra.mxu0 0.0
  %615 = vmatprep.subr.mxu0 0.0
  %616 = vmatpush1.msra.mxu0 0.0
  %617 = vmatprep.subr.mxu0 0.0
  %618 = vmatpush1.msra.mxu0 0.0
  %619 = vmatprep.subr.mxu0 0.0
  %620 = vmatpush1.msra.mxu0 0.0
  %621 = vmatprep.subr.mxu0 0.0
  %622 = vmatpush1.msra.mxu0 0.0
  %623 = vmatprep.subr.mxu0 0.0
  %624 = vmatpush1.msra.mxu0 0.0
  %625 = vmatprep.subr.mxu0 0.0
  %626 = vmatpush1.msra.mxu0 0.0
  %627 = vmatprep.subr.mxu0 0.0
  %628 = vmatpush1.msra.mxu0 0.0
  %629 = vmatprep.subr.mxu0 0.0
  %630 = vmatpush1.msra.mxu0 0.0
  %631 = vmatprep.subr.mxu0 0.0
  %632 = vmatpush1.msra.mxu0 0.0
  %633 = vmatprep.subr.mxu0 0.0
  %634 = vmatpush1.msra.mxu0 0.0
  %635 = vmatprep.subr.mxu0 0.0
  %636 = vmatpush1.msra.mxu0 0.0
  %637 = vmatprep.subr.mxu0 0.0
  %638 = vmatpush1.msra.mxu0 0.0
  %639 = vmatprep.subr.mxu0 0.0
  %640 = vmatpush1.msra.mxu0 0.0
  %641 = vmatprep.subr.mxu0 0.0
  %642 = vmatpush1.msra.mxu0 0.0
  %643 = vmatprep.subr.mxu0 0.0
  %644 = vmatpush1.msra.mxu0 0.0
  %645 = vmatprep.subr.mxu0 0.0
  %646 = vmatpush1.msra.mxu0 0.0
  %647 = vmatprep.subr.mxu0 0.0
  %648 = vmatpush1.msra.mxu0 0.0
  %649 = vmatprep.subr.mxu0 0.0
  %650 = vmatpush1.msra.mxu0 0.0
  %651 = vmatprep.mubr.f32.mxu0 0.0
  %652 = vmatmul.mubr.f32.gmra.mrb[0].mxu0 %v576
  %v653 = vpop.f32.mrb[0].mxu0
  %v654 = vadd.f32 0.0, %v653
  %v655 = vpop.f32.mrb[0].mxu0
  %v656 = vadd.f32 0.0, %v655
  %657 = vmatprep.mubr.f32.mxu0 0.0
  %658 = vmatmul.mubr.f32.gmra.mrb[0].mxu0 %v579
  %v659 = vpop.f32.mrb[0].mxu0
  %v660 = vadd.f32 0.0, %v659
  %v661 = vpop.f32.mrb[0].mxu0
  %v662 = vadd.f32 0.0, %v661
  %663 = vmatprep.mubr.f32.mxu0 0.0
  %664 = vmatmul.mubr.f32.gmra.mrb[0].mxu0 %v582
  %v665 = vpop.f32.mrb[0].mxu0
  %v666 = vadd.f32 0.0, %v665
  %v667 = vpop.f32.mrb[0].mxu0
  %v668 = vadd.f32 0.0, %v667
  %669 = vmatprep.mubr.f32.mxu0 0.0
  %670 = vmatmul.mubr.f32.gmra.mrb[0].mxu0 %v585
  %v671 = vpop.f32.mrb[0].mxu0
  %v672 = vadd.f32 0.0, %v671
  %v673 = vpop.f32.mrb[0].mxu0
  %v674 = vadd.f32 0.0, %v673
  %675 = vdwg.mxu0
  %v677 = vsel %vm574, %v26, 0
  %v680 = vsel %vm574, %v27, 0
  %v683 = vsel %vm574, %v28, 0
  %v686 = vsel %vm574, %v29, 0
  %688 = vmatprep.subr.mxu0 %v571
  %689 = vmatpush1.msra.mxu0 %v570
  %690 = vmatprep.subr.mxu0 0.0
  %691 = vmatpush1.msra.mxu0 0.0
  %692 = vmatprep.subr.mxu0 0.0
  %693 = vmatpush1.msra.mxu0 0.0
  %694 = vmatprep.subr.mxu0 0.0
  %695 = vmatpush1.msra.mxu0 0.0
  %696 = vmatprep.subr.mxu0 0.0
  %697 = vmatpush1.msra.mxu0 0.0
  %698 = vmatprep.subr.mxu0 0.0
  %699 = vmatpush1.msra.mxu0 0.0
  %700 = vmatprep.subr.mxu0 0.0
  %701 = vmatpush1.msra.mxu0 0.0
  %702 = vmatprep.subr.mxu0 0.0
  %703 = vmatpush1.msra.mxu0 0.0
  %704 = vmatprep.subr.mxu0 0.0
  %705 = vmatpush1.msra.mxu0 0.0
  %706 = vmatprep.subr.mxu0 0.0
  %707 = vmatpush1.msra.mxu0 0.0
  %708 = vmatprep.subr.mxu0 0.0
  %709 = vmatpush1.msra.mxu0 0.0
  %710 = vmatprep.subr.mxu0 0.0
  %711 = vmatpush1.msra.mxu0 0.0
  %712 = vmatprep.subr.mxu0 0.0
  %713 = vmatpush1.msra.mxu0 0.0
  %714 = vmatprep.subr.mxu0 0.0
  %715 = vmatpush1.msra.mxu0 0.0
  %716 = vmatprep.subr.mxu0 0.0
  %717 = vmatpush1.msra.mxu0 0.0
  %718 = vmatprep.subr.mxu0 0.0
  %719 = vmatpush1.msra.mxu0 0.0
  %720 = vmatprep.subr.mxu0 0.0
  %721 = vmatpush1.msra.mxu0 0.0
  %722 = vmatprep.subr.mxu0 0.0
  %723 = vmatpush1.msra.mxu0 0.0
  %724 = vmatprep.subr.mxu0 0.0
  %725 = vmatpush1.msra.mxu0 0.0
  %726 = vmatprep.subr.mxu0 0.0
  %727 = vmatpush1.msra.mxu0 0.0
  %728 = vmatprep.subr.mxu0 0.0
  %729 = vmatpush1.msra.mxu0 0.0
  %730 = vmatprep.subr.mxu0 0.0
  %731 = vmatpush1.msra.mxu0 0.0
  %732 = vmatprep.subr.mxu0 0.0
  %733 = vmatpush1.msra.mxu0 0.0
  %734 = vmatprep.subr.mxu0 0.0
  %735 = vmatpush1.msra.mxu0 0.0
  %736 = vmatprep.subr.mxu0 0.0
  %737 = vmatpush1.msra.mxu0 0.0
  %738 = vmatprep.subr.mxu0 0.0
  %739 = vmatpush1.msra.mxu0 0.0
  %740 = vmatprep.subr.mxu0 0.0
  %741 = vmatpush1.msra.mxu0 0.0
  %742 = vmatprep.subr.mxu0 0.0
  %743 = vmatpush1.msra.mxu0 0.0
  %744 = vmatprep.subr.mxu0 0.0
  %745 = vmatpush1.msra.mxu0 0.0
  %746 = vmatprep.subr.mxu0 0.0
  %747 = vmatpush1.msra.mxu0 0.0
  %748 = vmatprep.subr.mxu0 0.0
  %749 = vmatpush1.msra.mxu0 0.0
  %750 = vmatprep.subr.mxu0 0.0
  %751 = vmatpush1.msra.mxu0 0.0
  %752 = vmatprep.mubr.f32.mxu0 0.0
  %753 = vmatmul.mubr.f32.gmra.mrb[0].mxu0 %v677
  %v754 = vpop.f32.mrb[0].mxu0
  %v755 = vadd.f32 %v654, %v754
  %v756 = vpop.f32.mrb[0].mxu0
  %v757 = vadd.f32 %v656, %v756
  %758 = vmatprep.mubr.f32.mxu0 0.0
  %759 = vmatmul.mubr.f32.gmra.mrb[0].mxu0 %v680
  %v760 = vpop.f32.mrb[0].mxu0
  %v761 = vadd.f32 %v660, %v760
  %v762 = vpop.f32.mrb[0].mxu0
  %v763 = vadd.f32 %v662, %v762
  %764 = vmatprep.mubr.f32.mxu0 0.0
  %765 = vmatmul.mubr.f32.gmra.mrb[0].mxu0 %v683
  %v766 = vpop.f32.mrb[0].mxu0
  %v767 = vadd.f32 %v666, %v766
  %v768 = vpop.f32.mrb[0].mxu0
  %v769 = vadd.f32 %v668, %v768
  %770 = vmatprep.mubr.f32.mxu0 0.0
  %771 = vmatmul.mubr.f32.gmra.mrb[0].mxu0 %v686
  %v772 = vpop.f32.mrb[0].mxu0
  %v773 = vadd.f32 %v672, %v772
  %v774 = vpop.f32.mrb[0].mxu0
  %v775 = vadd.f32 %v674, %v774
  %776 = vdwg.mxu0
  %v777 = vld [vmem:[%s3 + $0x20] sm:$0xff]
  %v778 = vld [vmem:[%s3 + $0x28] sm:$0xff]
  %v780 = vsel %vm574, %v566, 0
  %v783 = vsel %vm574, %v567, 0
  %v786 = vsel %vm574, %v568, 0
  %v789 = vsel %vm574, %v569, 0
  %791 = vmatprep.subr.mxu0 %v778
  %792 = vmatpush1.msra.mxu0 %v777
  %793 = vmatprep.subr.mxu0 0.0
  %794 = vmatpush1.msra.mxu0 0.0
  %795 = vmatprep.subr.mxu0 0.0
  %796 = vmatpush1.msra.mxu0 0.0
  %797 = vmatprep.subr.mxu0 0.0
  %798 = vmatpush1.msra.mxu0 0.0
  %799 = vmatprep.subr.mxu0 0.0
  %800 = vmatpush1.msra.mxu0 0.0
  %801 = vmatprep.subr.mxu0 0.0
  %802 = vmatpush1.msra.mxu0 0.0
  %803 = vmatprep.subr.mxu0 0.0
  %804 = vmatpush1.msra.mxu0 0.0
  %805 = vmatprep.subr.mxu0 0.0
  %806 = vmatpush1.msra.mxu0 0.0
  %807 = vmatprep.subr.mxu0 0.0
  %808 = vmatpush1.msra.mxu0 0.0
  %809 = vmatprep.subr.mxu0 0.0
  %810 = vmatpush1.msra.mxu0 0.0
  %811 = vmatprep.subr.mxu0 0.0
  %812 = vmatpush1.msra.mxu0 0.0
  %813 = vmatprep.subr.mxu0 0.0
  %814 = vmatpush1.msra.mxu0 0.0
  %815 = vmatprep.subr.mxu0 0.0
  %816 = vmatpush1.msra.mxu0 0.0
  %817 = vmatprep.subr.mxu0 0.0
  %818 = vmatpush1.msra.mxu0 0.0
  %819 = vmatprep.subr.mxu0 0.0
  %820 = vmatpush1.msra.mxu0 0.0
  %821 = vmatprep.subr.mxu0 0.0
  %822 = vmatpush1.msra.mxu0 0.0
  %823 = vmatprep.subr.mxu0 0.0
  %824 = vmatpush1.msra.mxu0 0.0
  %825 = vmatprep.subr.mxu0 0.0
  %826 = vmatpush1.msra.mxu0 0.0
  %827 = vmatprep.subr.mxu0 0.0
  %828 = vmatpush1.msra.mxu0 0.0
  %829 = vmatprep.subr.mxu0 0.0
  %830 = vmatpush1.msra.mxu0 0.0
  %831 = vmatprep.subr.mxu0 0.0
  %832 = vmatpush1.msra.mxu0 0.0
  %833 = vmatprep.subr.mxu0 0.0
  %834 = vmatpush1.msra.mxu0 0.0
  %835 = vmatprep.subr.mxu0 0.0
  %836 = vmatpush1.msra.mxu0 0.0
  %837 = vmatprep.subr.mxu0 0.0
  %838 = vmatpush1.msra.mxu0 0.0
  %839 = vmatprep.subr.mxu0 0.0
  %840 = vmatpush1.msra.mxu0 0.0
  %841 = vmatprep.subr.mxu0 0.0
  %842 = vmatpush1.msra.mxu0 0.0
  %843 = vmatprep.subr.mxu0 0.0
  %844 = vmatpush1.msra.mxu0 0.0
  %845 = vmatprep.subr.mxu0 0.0
  %846 = vmatpush1.msra.mxu0 0.0
  %847 = vmatprep.subr.mxu0 0.0
  %848 = vmatpush1.msra.mxu0 0.0
  %849 = vmatprep.subr.mxu0 0.0
  %850 = vmatpush1.msra.mxu0 0.0
  %851 = vmatprep.subr.mxu0 0.0
  %852 = vmatpush1.msra.mxu0 0.0
  %853 = vmatprep.subr.mxu0 0.0
  %854 = vmatpush1.msra.mxu0 0.0
  %855 = vmatprep.mubr.f32.mxu0 0.0
  %856 = vmatmul.mubr.f32.gmra.mrb[0].mxu0 %v780
  %v857 = vpop.f32.mrb[0].mxu0
  %v858 = vadd.f32 0.0, %v857
  %v859 = vpop.f32.mrb[0].mxu0
  %v860 = vadd.f32 0.0, %v859
  %861 = vmatprep.mubr.f32.mxu0 0.0
  %862 = vmatmul.mubr.f32.gmra.mrb[0].mxu0 %v783
  %v863 = vpop.f32.mrb[0].mxu0
  %v864 = vadd.f32 0.0, %v863
  %v865 = vpop.f32.mrb[0].mxu0
  %v866 = vadd.f32 0.0, %v865
  %867 = vmatprep.mubr.f32.mxu0 0.0
  %868 = vmatmul.mubr.f32.gmra.mrb[0].mxu0 %v786
  %v869 = vpop.f32.mrb[0].mxu0
  %v870 = vadd.f32 0.0, %v869
  %v871 = vpop.f32.mrb[0].mxu0
  %v872 = vadd.f32 0.0, %v871
  %873 = vmatprep.mubr.f32.mxu0 0.0
  %874 = vmatmul.mubr.f32.gmra.mrb[0].mxu0 %v789
  %v875 = vpop.f32.mrb[0].mxu0
  %v876 = vadd.f32 0.0, %v875
  %v877 = vpop.f32.mrb[0].mxu0
  %v878 = vadd.f32 0.0, %v877
  %879 = vdwg.mxu0
  %v880 = vadd.f32 %v755, %v858
  %v881 = vadd.f32 %v757, %v860
  %v882 = vadd.f32 %v761, %v864
  %v883 = vadd.f32 %v763, %v866
  %v884 = vadd.f32 %v767, %v870
  %v885 = vadd.f32 %v769, %v872
  %v886 = vadd.f32 %v773, %v876
  %v887 = vadd.f32 %v775, %v878
  %v888 = vld [vmem:[%s5] sm:$0xff]
  %v889 = vld [vmem:[%s5 + $0x8] sm:$0xff]
  %v890 = vld [vmem:[%s5 + $0x10] sm:$0xff]
  %v891 = vld [vmem:[%s5 + $0x18] sm:$0xff]
  %v892 = vld [vmem:[%s5 + $0x20] sm:$0xff]
  %v893 = vld [vmem:[%s5 + $0x28] sm:$0xff]
  %v894 = vld [vmem:[%s5 + $0x30] sm:$0xff]
  %v895 = vld [vmem:[%s5 + $0x38] sm:$0xff]
  %v897 = vsel %vm38, %v34, 0
  %v900 = vsel %vm38, %v35, 0
  %v903 = vsel %vm38, %v36, 0
  %v906 = vsel %vm38, %v37, 0
  %908 = vmatprep.subr.mxu0 %v889
  %909 = vmatpush1.msra.mxu0 %v888
  %910 = vmatprep.subr.mxu0 %v891
  %911 = vmatpush1.msra.mxu0 %v890
  %912 = vmatprep.subr.mxu0 %v893
  %913 = vmatpush1.msra.mxu0 %v892
  %914 = vmatprep.subr.mxu0 %v895
  %915 = vmatpush1.msra.mxu0 %v894
  %916 = vmatprep.subr.mxu0 0.0
  %917 = vmatpush1.msra.mxu0 0.0
  %918 = vmatprep.subr.mxu0 0.0
  %919 = vmatpush1.msra.mxu0 0.0
  %920 = vmatprep.subr.mxu0 0.0
  %921 = vmatpush1.msra.mxu0 0.0
  %922 = vmatprep.subr.mxu0 0.0
  %923 = vmatpush1.msra.mxu0 0.0
  %924 = vmatprep.subr.mxu0 0.0
  %925 = vmatpush1.msra.mxu0 0.0
  %926 = vmatprep.subr.mxu0 0.0
  %927 = vmatpush1.msra.mxu0 0.0
  %928 = vmatprep.subr.mxu0 0.0
  %929 = vmatpush1.msra.mxu0 0.0
  %930 = vmatprep.subr.mxu0 0.0
  %931 = vmatpush1.msra.mxu0 0.0
  %932 = vmatprep.subr.mxu0 0.0
  %933 = vmatpush1.msra.mxu0 0.0
  %934 = vmatprep.subr.mxu0 0.0
  %935 = vmatpush1.msra.mxu0 0.0
  %936 = vmatprep.subr.mxu0 0.0
  %937 = vmatpush1.msra.mxu0 0.0
  %938 = vmatprep.subr.mxu0 0.0
  %939 = vmatpush1.msra.mxu0 0.0
  %940 = vmatprep.subr.mxu0 0.0
  %941 = vmatpush1.msra.mxu0 0.0
  %942 = vmatprep.subr.mxu0 0.0
  %943 = vmatpush1.msra.mxu0 0.0
  %944 = vmatprep.subr.mxu0 0.0
  %945 = vmatpush1.msra.mxu0 0.0
  %946 = vmatprep.subr.mxu0 0.0
  %947 = vmatpush1.msra.mxu0 0.0
  %948 = vmatprep.subr.mxu0 0.0
  %949 = vmatpush1.msra.mxu0 0.0
  %950 = vmatprep.subr.mxu0 0.0
  %951 = vmatpush1.msra.mxu0 0.0
  %952 = vmatprep.subr.mxu0 0.0
  %953 = vmatpush1.msra.mxu0 0.0
  %954 = vmatprep.subr.mxu0 0.0
  %955 = vmatpush1.msra.mxu0 0.0
  %956 = vmatprep.subr.mxu0 0.0
  %957 = vmatpush1.msra.mxu0 0.0
  %958 = vmatprep.subr.mxu0 0.0
  %959 = vmatpush1.msra.mxu0 0.0
  %960 = vmatprep.subr.mxu0 0.0
  %961 = vmatpush1.msra.mxu0 0.0
  %962 = vmatprep.subr.mxu0 0.0
  %963 = vmatpush1.msra.mxu0 0.0
  %964 = vmatprep.subr.mxu0 0.0
  %965 = vmatpush1.msra.mxu0 0.0
  %966 = vmatprep.subr.mxu0 0.0
  %967 = vmatpush1.msra.mxu0 0.0
  %968 = vmatprep.subr.mxu0 0.0
  %969 = vmatpush1.msra.mxu0 0.0
  %970 = vmatprep.subr.mxu0 0.0
  %971 = vmatpush1.msra.mxu0 0.0
  %972 = vmatprep.mubr.f32.mxu0 0.0
  %973 = vmatmul.mubr.f32.gmra.mrb[0].mxu0 %v897
  %v974 = vpop.f32.mrb[0].mxu0
  %v975 = vadd.f32 0.0, %v974
  %v976 = vpop.f32.mrb[0].mxu0
  %v977 = vadd.f32 0.0, %v976
  %978 = vmatprep.mubr.f32.mxu0 0.0
  %979 = vmatmul.mubr.f32.gmra.mrb[0].mxu0 %v900
  %v980 = vpop.f32.mrb[0].mxu0
  %v981 = vadd.f32 0.0, %v980
  %v982 = vpop.f32.mrb[0].mxu0
  %v983 = vadd.f32 0.0, %v982
  %984 = vmatprep.mubr.f32.mxu0 0.0
  %985 = vmatmul.mubr.f32.gmra.mrb[0].mxu0 %v903
  %v986 = vpop.f32.mrb[0].mxu0
  %v987 = vadd.f32 0.0, %v986
  %v988 = vpop.f32.mrb[0].mxu0
  %v989 = vadd.f32 0.0, %v988
  %990 = vmatprep.mubr.f32.mxu0 0.0
  %991 = vmatmul.mubr.f32.gmra.mrb[0].mxu0 %v906
  %v992 = vpop.f32.mrb[0].mxu0
  %v993 = vadd.f32 0.0, %v992
  %v994 = vpop.f32.mrb[0].mxu0
  %v995 = vadd.f32 0.0, %v994
  %996 = vdwg.mxu0
  %v997 = vld [vmem:[%s4] sm:$0xff]
  %v998 = vld [vmem:[%s4 + $0x8] sm:$0xff]
  %v999 = vld [vmem:[%s4 + $0x10] sm:$0xff]
  %v1000 = vld [vmem:[%s4 + $0x18] sm:$0xff]
  %1001 = vmatprep.subr.mxu0 0.0
  %1002 = vmatpush1.msra.mxu0 %v997
  %1003 = vmatprep.subr.mxu0 0.0
  %1004 = vmatpush1.msra.mxu0 %v998
  %1005 = vmatprep.subr.mxu0 0.0
  %1006 = vmatpush1.msra.mxu0 %v999
  %1007 = vmatprep.subr.mxu0 0.0
  %1008 = vmatpush1.msra.mxu0 %v1000
  %1009 = vmatprep.subr.mxu0 0.0
  %1010 = vmatpush1.msra.mxu0 0.0
  %1011 = vmatprep.subr.mxu0 0.0
  %1012 = vmatpush1.msra.mxu0 0.0
  %1013 = vmatprep.subr.mxu0 0.0
  %1014 = vmatpush1.msra.mxu0 0.0
  %1015 = vmatprep.subr.mxu0 0.0
  %1016 = vmatpush1.msra.mxu0 0.0
  %1017 = vmatprep.subr.mxu0 0.0
  %1018 = vmatpush1.msra.mxu0 0.0
  %1019 = vmatprep.subr.mxu0 0.0
  %1020 = vmatpush1.msra.mxu0 0.0
  %1021 = vmatprep.subr.mxu0 0.0
  %1022 = vmatpush1.msra.mxu0 0.0
  %1023 = vmatprep.subr.mxu0 0.0
  %1024 = vmatpush1.msra.mxu0 0.0
  %1025 = vmatprep.subr.mxu0 0.0
  %1026 = vmatpush1.msra.mxu0 0.0
  %1027 = vmatprep.subr.mxu0 0.0
  %1028 = vmatpush1.msra.mxu0 0.0
  %1029 = vmatprep.subr.mxu0 0.0
  %1030 = vmatpush1.msra.mxu0 0.0
  %1031 = vmatprep.subr.mxu0 0.0
  %1032 = vmatpush1.msra.mxu0 0.0
  %1033 = vmatprep.subr.mxu0 0.0
  %1034 = vmatpush1.msra.mxu0 0.0
  %1035 = vmatprep.subr.mxu0 0.0
  %1036 = vmatpush1.msra.mxu0 0.0
  %1037 = vmatprep.subr.mxu0 0.0
  %1038 = vmatpush1.msra.mxu0 0.0
  %1039 = vmatprep.subr.mxu0 0.0
  %1040 = vmatpush1.msra.mxu0 0.0
  %1041 = vmatprep.subr.mxu0 0.0
  %1042 = vmatpush1.msra.mxu0 0.0
  %1043 = vmatprep.subr.mxu0 0.0
  %1044 = vmatpush1.msra.mxu0 0.0
  %1045 = vmatprep.subr.mxu0 0.0
  %1046 = vmatpush1.msra.mxu0 0.0
  %1047 = vmatprep.subr.mxu0 0.0
  %1048 = vmatpush1.msra.mxu0 0.0
  %1049 = vmatprep.subr.mxu0 0.0
  %1050 = vmatpush1.msra.mxu0 0.0
  %1051 = vmatprep.subr.mxu0 0.0
  %1052 = vmatpush1.msra.mxu0 0.0
  %1053 = vmatprep.subr.mxu0 0.0
  %1054 = vmatpush1.msra.mxu0 0.0
  %1055 = vmatprep.subr.mxu0 0.0
  %1056 = vmatpush1.msra.mxu0 0.0
  %1057 = vmatprep.subr.mxu0 0.0
  %1058 = vmatpush1.msra.mxu0 0.0
  %1059 = vmatprep.subr.mxu0 0.0
  %1060 = vmatpush1.msra.mxu0 0.0
  %1061 = vmatprep.subr.mxu0 0.0
  %1062 = vmatpush1.msra.mxu0 0.0
  %1063 = vmatprep.subr.mxu0 0.0
  %1064 = vmatpush1.msra.mxu0 0.0
  %1065 = vmatprep.mubr.f32.mxu0 0.0
  %1066 = vmatmul.mubr.f32.gmra.mrb[0].mxu0 %v897
  %v1067 = vpop.f32.mrb[0].mxu0
  %v1068 = vadd.f32 0.0, %v1067
  %v1069 = vpop.f32.mrb[0].mxu0
  %1070 = vmatprep.mubr.f32.mxu0 0.0
  %1071 = vmatmul.mubr.f32.gmra.mrb[0].mxu0 %v900
  %v1072 = vpop.f32.mrb[0].mxu0
  %v1073 = vadd.f32 0.0, %v1072
  %v1074 = vpop.f32.mrb[0].mxu0
  %1075 = vmatprep.mubr.f32.mxu0 0.0
  %1076 = vmatmul.mubr.f32.gmra.mrb[0].mxu0 %v903
  %v1077 = vpop.f32.mrb[0].mxu0
  %v1078 = vadd.f32 0.0, %v1077
  %v1079 = vpop.f32.mrb[0].mxu0
  %1080 = vmatprep.mubr.f32.mxu0 0.0
  %1081 = vmatmul.mubr.f32.gmra.mrb[0].mxu0 %v906
  %v1082 = vpop.f32.mrb[0].mxu0
  %v1083 = vadd.f32 0.0, %v1082
  %v1084 = vpop.f32.mrb[0].mxu0
  %1085 = vdwg.mxu0
  %v1086 = vmul.f32 %v975, %v880
  %v1087 = vmul.f32 %v977, %v881
  %v1088 = vmul.f32 %v981, %v882
  %v1089 = vmul.f32 %v983, %v883
  %v1090 = vmul.f32 %v987, %v884
  %v1091 = vmul.f32 %v989, %v885
  %v1092 = vmul.f32 %v993, %v886
  %v1093 = vmul.f32 %v995, %v887
  %v1094 = vld [vmem:[%s6] sm:$0xff]
  %v1095 = vld [vmem:[%s6 + $0x8] sm:$0xff]
  %v1096 = vld [vmem:[%s6 + $0x10] sm:$0xff]
  %v1097 = vld [vmem:[%s6 + $0x18] sm:$0xff]
  %v1098 = vld [vmem:[%s6 + $0x20] sm:$0xff]
  %v1099 = vld [vmem:[%s6 + $0x28] sm:$0xff]
  %v1100 = vld [vmem:[%s6 + $0x30] sm:$0xff]
  %v1101 = vld [vmem:[%s6 + $0x38] sm:$0xff]
  %v1102 = vld [vmem:[%s6 + $0x40] sm:$0xff]
  %v1103 = vld [vmem:[%s6 + $0x48] sm:$0xff]
  %v1104 = vld [vmem:[%s6 + $0x50] sm:$0xff]
  %v1105 = vld [vmem:[%s6 + $0x58] sm:$0xff]
  %v1106 = vld [vmem:[%s6 + $0x60] sm:$0xff]
  %v1107 = vld [vmem:[%s6 + $0x68] sm:$0xff]
  %v1108 = vld [vmem:[%s6 + $0x70] sm:$0xff]
  %v1109 = vld [vmem:[%s6 + $0x78] sm:$0xff]
  %v1110 = vld [vmem:[%s6 + $0x80] sm:$0xff]
  %v1111 = vld [vmem:[%s6 + $0x88] sm:$0xff]
  %v1112 = vld [vmem:[%s6 + $0x90] sm:$0xff]
  %v1113 = vld [vmem:[%s6 + $0x98] sm:$0xff]
  %v1114 = vld [vmem:[%s6 + $0xa0] sm:$0xff]
  %v1115 = vld [vmem:[%s6 + $0xa8] sm:$0xff]
  %v1116 = vld [vmem:[%s6 + $0xb0] sm:$0xff]
  %v1117 = vld [vmem:[%s6 + $0xb8] sm:$0xff]
  %v1118 = vld [vmem:[%s6 + $0xc0] sm:$0xff]
  %v1119 = vld [vmem:[%s6 + $0xc8] sm:$0xff]
  %v1120 = vld [vmem:[%s6 + $0xd0] sm:$0xff]
  %v1121 = vld [vmem:[%s6 + $0xd8] sm:$0xff]
  %v1122 = vld [vmem:[%s6 + $0xe0] sm:$0xff]
  %v1123 = vld [vmem:[%s6 + $0xe8] sm:$0xff]
  %v1124 = vld [vmem:[%s6 + $0xf0] sm:$0xff]
  %v1125 = vld [vmem:[%s6 + $0xf8] sm:$0xff]
  %1126 = vmatprep.subr.mxu0 0.0
  %1127 = vmatpush1.msra.mxu0 %v1094
  %1128 = vmatprep.subr.mxu0 0.0
  %1129 = vmatpush1.msra.mxu0 %v1095
  %1130 = vmatprep.subr.mxu0 0.0
  %1131 = vmatpush1.msra.mxu0 %v1096
  %1132 = vmatprep.subr.mxu0 0.0
  %1133 = vmatpush1.msra.mxu0 %v1097
  %1134 = vmatprep.subr.mxu0 0.0
  %1135 = vmatpush1.msra.mxu0 %v1098
  %1136 = vmatprep.subr.mxu0 0.0
  %1137 = vmatpush1.msra.mxu0 %v1099
  %1138 = vmatprep.subr.mxu0 0.0
  %1139 = vmatpush1.msra.mxu0 %v1100
  %1140 = vmatprep.subr.mxu0 0.0
  %1141 = vmatpush1.msra.mxu0 %v1101
  %1142 = vmatprep.subr.mxu0 0.0
  %1143 = vmatpush1.msra.mxu0 %v1102
  %1144 = vmatprep.subr.mxu0 0.0
  %1145 = vmatpush1.msra.mxu0 %v1103
  %1146 = vmatprep.subr.mxu0 0.0
  %1147 = vmatpush1.msra.mxu0 %v1104
  %1148 = vmatprep.subr.mxu0 0.0
  %1149 = vmatpush1.msra.mxu0 %v1105
  %1150 = vmatprep.subr.mxu0 0.0
  %1151 = vmatpush1.msra.mxu0 %v1106
  %1152 = vmatprep.subr.mxu0 0.0
  %1153 = vmatpush1.msra.mxu0 %v1107
  %1154 = vmatprep.subr.mxu0 0.0
  %1155 = vmatpush1.msra.mxu0 %v1108
  %1156 = vmatprep.subr.mxu0 0.0
  %1157 = vmatpush1.msra.mxu0 %v1109
  %1158 = vmatprep.subr.mxu0 0.0
  %1159 = vmatpush1.msra.mxu0 %v1110
  %1160 = vmatprep.subr.mxu0 0.0
  %1161 = vmatpush1.msra.mxu0 %v1111
  %1162 = vmatprep.subr.mxu0 0.0
  %1163 = vmatpush1.msra.mxu0 %v1112
  %1164 = vmatprep.subr.mxu0 0.0
  %1165 = vmatpush1.msra.mxu0 %v1113
  %1166 = vmatprep.subr.mxu0 0.0
  %1167 = vmatpush1.msra.mxu0 %v1114
  %1168 = vmatprep.subr.mxu0 0.0
  %1169 = vmatpush1.msra.mxu0 %v1115
  %1170 = vmatprep.subr.mxu0 0.0
  %1171 = vmatpush1.msra.mxu0 %v1116
  %1172 = vmatprep.subr.mxu0 0.0
  %1173 = vmatpush1.msra.mxu0 %v1117
  %1174 = vmatprep.subr.mxu0 0.0
  %1175 = vmatpush1.msra.mxu0 %v1118
  %1176 = vmatprep.subr.mxu0 0.0
  %1177 = vmatpush1.msra.mxu0 %v1119
  %1178 = vmatprep.subr.mxu0 0.0
  %1179 = vmatpush1.msra.mxu0 %v1120
  %1180 = vmatprep.subr.mxu0 0.0
  %1181 = vmatpush1.msra.mxu0 %v1121
  %1182 = vmatprep.subr.mxu0 0.0
  %1183 = vmatpush1.msra.mxu0 %v1122
  %1184 = vmatprep.subr.mxu0 0.0
  %1185 = vmatpush1.msra.mxu0 %v1123
  %1186 = vmatprep.subr.mxu0 0.0
  %1187 = vmatpush1.msra.mxu0 %v1124
  %1188 = vmatprep.subr.mxu0 0.0
  %1189 = vmatpush1.msra.mxu0 %v1125
  %1190 = vmatprep.mubr.f32.mxu0 %v1087
  %1191 = vmatmul.mubr.f32.gmra.mrb[0].mxu0 %v1086
  %v1192 = vpop.f32.mrb[0].mxu0
  %v1193 = vadd.f32 %v1068, %v1192
  %v1194 = vpop.f32.mrb[0].mxu0
  %1195 = vmatprep.mubr.f32.mxu0 %v1089
  %1196 = vmatmul.mubr.f32.gmra.mrb[0].mxu0 %v1088
  %v1197 = vpop.f32.mrb[0].mxu0
  %v1198 = vadd.f32 %v1073, %v1197
  %v1199 = vpop.f32.mrb[0].mxu0
  %1200 = vmatprep.mubr.f32.mxu0 %v1091
  %1201 = vmatmul.mubr.f32.gmra.mrb[0].mxu0 %v1090
  %v1202 = vpop.f32.mrb[0].mxu0
  %v1203 = vadd.f32 %v1078, %v1202
  %v1204 = vpop.f32.mrb[0].mxu0
  %1205 = vmatprep.mubr.f32.mxu0 %v1093
  %1206 = vmatmul.mubr.f32.gmra.mrb[0].mxu0 %v1092
  %v1207 = vpop.f32.mrb[0].mxu0
  %v1208 = vadd.f32 %v1083, %v1207
  %v1209 = vpop.f32.mrb[0].mxu0
  %1210 = vdwg.mxu0
  %1211 = vst.msk [vmem:[%s7] sm:$0xff] %vm574, %v1193
  %1212 = vst.msk [vmem:[%s7 + $0x8] sm:$0xff] %vm574, %v1198
  %1213 = vst.msk [vmem:[%s7 + $0x10] sm:$0xff] %vm574, %v1203
  %1214 = vst.msk [vmem:[%s7 + $0x18] sm:$0xff] %vm574, %v1208
  // Predicated region
  $region30: #{tpu_custom_call.1} parent=0 // pred_check
    _
  $region31: #{tpu_custom_call.1} parent=0 // pred_check_branch
    %1216 = sbr.rel (0) target = $region33
  $region32: #{tpu_custom_call.1} parent=0 // pred_region
    _
  $region33: #{tpu_custom_call.1} parent=0 // pred_fallthru
    _
  // Predicated region
  $region34: #{tpu_custom_call.1} parent=0 // pred_check
    _
  $region35: #{tpu_custom_call.1} parent=0 // pred_check_branch
    %1218 = sbr.rel (0) target = $region37
  $region36: #{tpu_custom_call.1} parent=0 // pred_region
    _
  $region37: #{tpu_custom_call.1} parent=0 // pred_fallthru
    _

</llo_original>
